<compile_context>
chip_gen: v6e
topology: v6e:2x2x1
jax: 0.10.0
libtpu: 0.0.40
codegen_flags: <defaults>
</compile_context>

<pallas_src>
import functools

import jax
import jax.numpy as jnp
from jax import lax
from jax.experimental import pallas as pl
from jax.experimental.pallas import tpu as pltpu


def _round_up(x, m):
    return ((x + m - 1) // m) * m


def _tpu_vmem_capacity_bytes():
    """Best-effort per-core VMEM capacity (128 MiB v5e/v6e, 64 MiB v7x)."""
    cap = None
    try:
        cap = getattr(pltpu.get_tpu_info(), "vmem_capacity_bytes", None)
    except Exception:
        cap = None
    if not cap:
        cap = 128 * 1024 * 1024
        try:
            if "v7" in jax.devices()[0].device_kind.lower():
                cap = 64 * 1024 * 1024
        except Exception:
            pass
    return int(cap)


def _is_v5_device():
    try:
        return "v5" in jax.devices()[0].device_kind.lower()
    except Exception:
        return False


# --------------------------- fused HLCLConv kernel ---------------------------
def _hlcl_fused_kernel(a_ref, x_ref, w_ref, b_ref, o_ref, h0_ref, h1_ref, *,
                       tm, num_layers, a_resident):
    """One grid step = (phase p, row-block i).

    Phase p=0:     prologue, H_0[stripe i] = X[stripe i] @ W_0
    Phase p=1..L:  layer l = p-1:
                     z = relu(A[stripe i] @ H_{p-1} + b_{p-1})
                     if p < L:  H_p[stripe i] = z @ W_p          (layer pipelining)
                     if p == L: out[stripe i] = z

    a_ref : (n_pad, n_pad) bf16 resident A_hat  OR  (tm, n_pad) streamed stripe
    x_ref : (n_pad, d_pad) bf16 resident node features (read only at p==0)
    w_ref : (1, d_pad, d_pad) bf16  W_{min(p, L-1)}
    b_ref : (1, 1, d_pad) f32       b_{max(p-1, 0)}
    o_ref : (n_pad, d_pad) bf16 resident output carrier (written at p==L only)
    h0/h1 : (n_pad, d_pad) bf16 ping-pong H buffers (H_l lives in slot l % 2)
    """
    p = pl.program_id(0)
    i = pl.program_id(1)
    row0 = pl.multiple_of(i * tm, tm)

    # ---- prologue: H_0 stripe = X stripe @ W_0 (slot 0) ----
    @pl.when(p == 0)
    def _():
        h0_ref[pl.ds(row0, tm), :] = jnp.dot(
            x_ref[pl.ds(row0, tm), :], w_ref[0],
            preferred_element_type=jnp.float32).astype(jnp.bfloat16)

    # ---- layer step for phases 1..L ----
    def _layer_step(h_cur_ref, h_nxt_ref):
        if a_resident:
            a_stripe = a_ref[pl.ds(row0, tm), :]        # slice the resident matrix
        else:
            a_stripe = a_ref[...]                       # streamed stripe
        acc = jnp.dot(a_stripe, h_cur_ref[...], preferred_element_type=jnp.float32)
        z = jnp.maximum(acc + b_ref[0], 0.0)            # (tm, d_pad) f32

        @pl.when(p < num_layers)
        def _():
            # Pipelined feature transform: apply NEXT layer's weight to this
            # stripe right away so no full-matrix matmul stalls the next layer.
            h_nxt_ref[pl.ds(row0, tm), :] = jnp.dot(
                z.astype(jnp.bfloat16), w_ref[0],
                preferred_element_type=jnp.float32).astype(jnp.bfloat16)

        @pl.when(p == num_layers)
        def _():
            o_ref[pl.ds(row0, tm), :] = z.astype(o_ref.dtype)

    parity = lax.rem(p, 2)   # destination slot for H_p; source slot is 1 - parity

    @pl.when(jnp.logical_and(p > 0, parity == 1))
    def _():
        _layer_step(h0_ref, h1_ref)

    @pl.when(jnp.logical_and(p > 0, parity == 0))
    def _():
        _layer_step(h1_ref, h0_ref)


def _hlcl_pallas(a_hat, x_pad, w_stack, b_stack, *, tm, a_resident, vmem_limit):
    num_layers, d_pad, _ = w_stack.shape
    n_pad = x_pad.shape[0]
    n_row_blocks = n_pad // tm

    if a_resident:
        # Constant block index -> A is DMA'd from HBM once and stays in VMEM.
        a_spec = pl.BlockSpec((n_pad, n_pad), lambda p, i: (0, 0))
        a_stream_factor = 1
    else:
        # Fallback: stream (tm, n_pad) stripes (re-fetched every phase).
        a_spec = pl.BlockSpec((tm, n_pad), lambda p, i: (i, 0))
        a_stream_factor = num_layers + 1

    flops = num_layers * (2 * n_pad * d_pad * d_pad + 2 * n_pad * n_pad * d_pad)
    bytes_accessed = (a_hat.size * 2 * a_stream_factor + x_pad.size * 2
                      + w_stack.size * 2 + b_stack.size * 4 + n_pad * d_pad * 2)

    kernel = functools.partial(_hlcl_fused_kernel, tm=tm, num_layers=num_layers,
                               a_resident=a_resident)

    return pl.pallas_call(
        kernel,
        out_shape=jax.ShapeDtypeStruct((n_pad, d_pad), jnp.bfloat16),
        grid_spec=pltpu.PrefetchScalarGridSpec(
            num_scalar_prefetch=0,
            grid=(num_layers + 1, n_row_blocks),
            in_specs=[
                a_spec,                                                   # A_hat
                pl.BlockSpec((n_pad, d_pad), lambda p, i: (0, 0)),        # x (resident)
                pl.BlockSpec((1, d_pad, d_pad),                           # W_{min(p,L-1)}
                             lambda p, i: (jnp.minimum(p, num_layers - 1), 0, 0)),
                pl.BlockSpec((1, 1, d_pad),                               # b_{max(p-1,0)}
                             lambda p, i: (jnp.maximum(p - 1, 0), 0, 0)),
            ],
            out_specs=pl.BlockSpec((n_pad, d_pad), lambda p, i: (0, 0)),  # resident out
            scratch_shapes=[pltpu.VMEM((n_pad, d_pad), jnp.bfloat16),     # H ping
                            pltpu.VMEM((n_pad, d_pad), jnp.bfloat16)],    # H pong
        ),
        compiler_params=pltpu.CompilerParams(
            # Phase axis carries the H ping-pong dependency; row axis writes a
            # shared scratch read by the next phase -> both sequential.
            dimension_semantics=("arbitrary", "arbitrary"),
            vmem_limit_bytes=vmem_limit,
        ),
        cost_estimate=pl.CostEstimate(
            flops=flops, transcendentals=0, bytes_accessed=bytes_accessed),
    )(a_hat, x_pad, w_stack, b_stack)


# ---------------- Glue: dense normalized propagation matrix -----------------
def build_prop_matrix(edge_index, edge_weight, num_nodes, n_pad, high_pass):
    src, dst = edge_index[0], edge_index[1]
    if edge_weight is None:
        edge_weight = jnp.ones(src.shape[0], dtype=jnp.float32)
    # A[i, j] = weight of edge j -> i (message flows src -> dst); duplicates add.
    adj = jnp.zeros((num_nodes, num_nodes), jnp.float32).at[dst, src].add(edge_weight)
    adj = adj + jnp.eye(num_nodes, dtype=jnp.float32)        # add_self_loops
    deg = adj.sum(axis=1)
    dinv_sqrt = jnp.where(deg > 0, 1.0 / jnp.sqrt(deg), 0.0)
    a_hat = dinv_sqrt[:, None] * adj * dinv_sqrt[None, :]
    if high_pass:                                            # sym Laplacian
        a_hat = jnp.eye(num_nodes, dtype=jnp.float32) - a_hat
    out = jnp.zeros((n_pad, n_pad), jnp.float32).at[:num_nodes, :num_nodes].set(a_hat)
    # Error model: A_hat and the inter-layer H are bf16 (~0.4% rel per matmul,
    # compounding per layer); f32 accumulation on the MXU.
    return out.astype(jnp.bfloat16)


# ---------------- HLCLConv forward (eval mode) -------------------------------
def hlcl_forward(params, x, edge_index, edge_weight=None, high_pass=False):
    num_nodes, input_dim = x.shape
    num_layers = len(params)
    hidden_dim = params[-1][0].shape[1]

    # Generation-aware VMEM budget: ~40 MiB on v7x (64 MiB/TC), ~100 MiB on v5e/v6e.
    vmem_cap = _tpu_vmem_capacity_bytes()
    vmem_limit = max(32 << 20, min(vmem_cap - (24 << 20), 100 << 20))

    dims = [input_dim] + [w.shape[1] for w, _ in params]
    d_pad = _round_up(max(max(dims), 128), 128)              # lane-dense features
    if d_pad > 128 and not _is_v5_device():
        d_pad = _round_up(d_pad, 256)                        # fill 256-wide MXU (v6e/v7x)

    tm_cap = 512 if vmem_cap >= (96 << 20) else 256          # bigger stripes on v5e/v6e
    n_pad = _round_up(num_nodes, 16)                         # native bf16 (16,128) packing
    if n_pad <= tm_cap:
        tm = n_pad
    else:
        tm = tm_cap
        n_pad = _round_up(num_nodes, tm)

    # Resident-A decision (conservative: assumes double-buffered blocks).
    resident_budget = (2 * n_pad * n_pad * 2          # A_hat bf16
                       + 2 * n_pad * d_pad * 2        # x bf16
                       + 2 * n_pad * d_pad * 2        # H ping-pong scratch
                       + 2 * n_pad * d_pad * 2        # bf16 output carrier
                       + 2 * d_pad * d_pad * 2        # W block
                       + (2 << 20))                   # headroom
    a_resident = resident_budget <= vmem_limit

    a_hat = build_prop_matrix(edge_index, edge_weight, num_nodes, n_pad, high_pass)
    x_pad = jnp.zeros((n_pad, d_pad), jnp.bfloat16).at[:num_nodes, :input_dim].set(
        x.astype(jnp.bfloat16))

    w_stack = jnp.zeros((num_layers, d_pad, d_pad), jnp.bfloat16)
    b_stack = jnp.zeros((num_layers, 1, d_pad), jnp.float32)
    for li, (w, b) in enumerate(params):
        fi, fo = w.shape
        w_stack = w_stack.at[li, :fi, :fo].set(w.astype(jnp.bfloat16))
        b_stack = b_stack.at[li, 0, :fo].set(b.astype(jnp.float32))

    out = _hlcl_pallas(a_hat, x_pad, w_stack, b_stack, tm=tm,
                       a_resident=a_resident, vmem_limit=vmem_limit)
    return out[:num_nodes, :hidden_dim].astype(jnp.float32)


# ---------------- Pure-JAX f32 reference (for sanity check) -----------------
def hlcl_reference(params, x, edge_index, edge_weight=None, high_pass=False):
    n = x.shape[0]
    src, dst = edge_index[0], edge_index[1]
    ew = jnp.ones(src.shape[0], jnp.float32) if edge_weight is None else edge_weight
    adj = jnp.zeros((n, n), jnp.float32).at[dst, src].add(ew) + jnp.eye(n)
    deg = adj.sum(axis=1)
    dis = jnp.where(deg > 0, 1.0 / jnp.sqrt(deg), 0.0)
    a_hat = dis[:, None] * adj * dis[None, :]
    if high_pass:
        a_hat = jnp.eye(n) - a_hat
    z = x
    for w, b in params:
        z = jnp.maximum(a_hat @ (z @ w) + b, 0.0)
    return z


# ---------------- Deterministic parameter init (torch Linear-like) ----------
def init_params(key, input_dim, hidden_dim, num_layers):
    dims = [input_dim] + [hidden_dim] * num_layers
    keys = jax.random.split(key, num_layers)
    params = []
    for i in range(num_layers):
        fan_in, fan_out = dims[i], dims[i + 1]
        bound = 1.0 / jnp.sqrt(jnp.float32(fan_in))
        w = jax.random.uniform(keys[i], (fan_in, fan_out), jnp.float32, -bound, bound)
        b = jnp.zeros((fan_out,), jnp.float32)   # Mix_Pass.reset_parameters zeroes bias
        params.append((w, b))
    return params


if __name__ == "__main__":
    key = jax.random.PRNGKey(0)
    k_x, k_src, k_dst, k_w = jax.random.split(key, 4)

    num_nodes, input_dim, hidden_dim, num_layers = 16, 8, 32, 2

    x = jax.random.normal(k_x, (num_nodes, input_dim), jnp.float32)

    # random undirected edge list (2, E)
    n_edges = 40
    src = jax.random.randint(k_src, (n_edges,), 0, num_nodes)
    dst = jax.random.randint(k_dst, (n_edges,), 0, num_nodes)
    edge_index = jnp.stack(
        [jnp.concatenate([src, dst]), jnp.concatenate([dst, src])], axis=0
    )

    params = init_params(k_w, input_dim, hidden_dim, num_layers)

    ok = True
    for hp in (False, True):
        out = hlcl_forward(params, x, edge_index, edge_weight=None, high_pass=hp)
        out = jax.block_until_ready(out)
        assert out.shape == (num_nodes, hidden_dim)
        ref = hlcl_reference(params, x, edge_index, edge_weight=None, high_pass=hp)
        # bf16 matmul inputs / bf16 inter-layer carrier with f32 accumulation
        ok = ok and bool(jnp.allclose(out, ref, atol=5e-2, rtol=5e-2))

    if ok:
        print("KERNEL_OK")
    else:
        print("KERNEL_MISMATCH")
</pallas_src>

<mosaic_0001>
module attributes {stable_mosaic.version = 11 : i64} {
  func.func @_hlcl_fused_kernel(%arg0: i32, %arg1: i32, %arg2: memref<16x16xbf16, #tpu.memory_space<vmem>>, %arg3: memref<16x128xbf16, #tpu.memory_space<vmem>>, %arg4: memref<1x128x128xbf16, #tpu.memory_space<vmem>>, %arg5: memref<1x1x128xf32, #tpu.memory_space<vmem>>, %arg6: memref<16x128xbf16, #tpu.memory_space<vmem>>, %arg7: memref<16x128xbf16, #tpu.memory_space<vmem>>, %arg8: memref<16x128xbf16, #tpu.memory_space<vmem>>) attributes {dimension_semantics = [#tpu.dimension_semantics<arbitrary>, #tpu.dimension_semantics<arbitrary>], iteration_bounds = array<i64: 3, 1>, scalar_prefetch = 0 : i64, scratch_operands = 2 : i64, tpu.core_type = #tpu.core_type<tc>, window_params = [{pipeline_mode = #tpu.pipeline_mode<synchronous>, transform_indices = @transform_0, window_bounds = array<i64: 16, 16>}, {pipeline_mode = #tpu.pipeline_mode<synchronous>, transform_indices = @transform_1, window_bounds = array<i64: 16, 128>}, {transform_indices = @transform_2, window_bounds = array<i64: 1, 128, 128>}, {transform_indices = @transform_3, window_bounds = array<i64: 1, 1, 128>}, {pipeline_mode = #tpu.pipeline_mode<synchronous>, transform_indices = @transform_4, window_bounds = array<i64: 16, 128>}]} {
    %c16_i32 = arith.constant 16 : i32
    %0 = arith.muli %arg1, %c16_i32 : i32
    %1 = tpu.assume_multiple %0, 16 : i32
    %c0_i32 = arith.constant 0 : i32
    %2 = arith.cmpi eq, %arg0, %c0_i32 : i32
    %3 = arith.extui %2 : i1 to i32
    %c0_i32_0 = arith.constant 0 : i32
    %4 = arith.cmpi ne, %3, %c0_i32_0 : i32
    scf.if %4 {
      %16 = arith.index_cast %1 : i32 to index
      %c0 = arith.constant 0 : index
      %17 = vector.load %arg3[%16, %c0] : memref<16x128xbf16, #tpu.memory_space<vmem>>, vector<16x128xbf16>
      %c0_6 = arith.constant 0 : index
      %c0_7 = arith.constant 0 : index
      %c0_8 = arith.constant 0 : index
      %18 = vector.load %arg4[%c0_6, %c0_7, %c0_8] : memref<1x128x128xbf16, #tpu.memory_space<vmem>>, vector<1x128x128xbf16>
      %19 = vector.shape_cast %18 : vector<1x128x128xbf16> to vector<128x128xbf16>
      %cst = arith.constant dense<0.000000e+00> : vector<16x128xf32>
      %20 = tpu.matmul %17, %19, %cst {dimension_numbers = #tpu.dot_dimension_numbers<[1], [0], [0], [1], [0, 0, 1, 1], [], []>} : vector<16x128xbf16>, vector<128x128xbf16>, vector<16x128xf32> -> vector<16x128xf32>
      %21 = arith.truncf %20 : vector<16x128xf32> to vector<16x128xbf16>
      %22 = arith.index_cast %1 : i32 to index
      %c0_9 = arith.constant 0 : index
      %23 = vector.load %arg7[%22, %c0_9] : memref<16x128xbf16, #tpu.memory_space<vmem>>, vector<16x128xbf16>
      tpu.vector_store %arg7[%22, %c0_9], %21 {strides = array<i32>} : memref<16x128xbf16, #tpu.memory_space<vmem>>, vector<16x128xbf16>,
    } else {
    }
    %c2_i32 = arith.constant 2 : i32
    %5 = arith.remsi %arg0, %c2_i32 : i32
    %c0_i32_1 = arith.constant 0 : i32
    %6 = arith.cmpi sgt, %arg0, %c0_i32_1 : i32
    %c1_i32 = arith.constant 1 : i32
    %7 = arith.cmpi eq, %5, %c1_i32 : i32
    %8 = arith.andi %6, %7 : i1
    %9 = arith.extui %8 : i1 to i32
    %c0_i32_2 = arith.constant 0 : i32
    %10 = arith.cmpi ne, %9, %c0_i32_2 : i32
    scf.if %10 {
      %16 = arith.index_cast %1 : i32 to index
      %c0 = arith.constant 0 : index
      %17 = vector.load %arg2[%16, %c0] : memref<16x16xbf16, #tpu.memory_space<vmem>>, vector<16x16xbf16>
      %c0_6 = arith.constant 0 : index
      %c0_7 = arith.constant 0 : index
      %18 = vector.load %arg7[%c0_6, %c0_7] : memref<16x128xbf16, #tpu.memory_space<vmem>>, vector<16x128xbf16>
      %cst = arith.constant dense<0.000000e+00> : vector<16x128xf32>
      %19 = tpu.matmul %17, %18, %cst {dimension_numbers = #tpu.dot_dimension_numbers<[1], [0], [0], [1], [0, 0, 1, 1], [], []>} : vector<16x16xbf16>, vector<16x128xbf16>, vector<16x128xf32> -> vector<16x128xf32>
      %c0_8 = arith.constant 0 : index
      %c0_9 = arith.constant 0 : index
      %c0_10 = arith.constant 0 : index
      %20 = vector.load %arg5[%c0_8, %c0_9, %c0_10] : memref<1x1x128xf32, #tpu.memory_space<vmem>>, vector<1x1x128xf32>
      %21 = vector.shape_cast %20 : vector<1x1x128xf32> to vector<1x128xf32>
      %22 = vector.broadcast %21 : vector<1x128xf32> to vector<16x128xf32>
      %23 = arith.addf %19, %22 : vector<16x128xf32>
      %cst_11 = arith.constant 0.000000e+00 : f32
      %24 = vector.broadcast %cst_11 : f32 to vector<16x128xf32>
      %25 = arith.maximumf %23, %24 : vector<16x128xf32>
      %c2_i32_12 = arith.constant 2 : i32
      %26 = arith.cmpi slt, %arg0, %c2_i32_12 : i32
      %27 = arith.extui %26 : i1 to i32
      %c0_i32_13 = arith.constant 0 : i32
      %28 = arith.cmpi ne, %27, %c0_i32_13 : i32
      scf.if %28 {
        %32 = arith.truncf %25 : vector<16x128xf32> to vector<16x128xbf16>
        %c0_16 = arith.constant 0 : index
        %c0_17 = arith.constant 0 : index
        %c0_18 = arith.constant 0 : index
        %33 = vector.load %arg4[%c0_16, %c0_17, %c0_18] : memref<1x128x128xbf16, #tpu.memory_space<vmem>>, vector<1x128x128xbf16>
        %34 = vector.shape_cast %33 : vector<1x128x128xbf16> to vector<128x128xbf16>
        %cst_19 = arith.constant dense<0.000000e+00> : vector<16x128xf32>
        %35 = tpu.matmul %32, %34, %cst_19 {dimension_numbers = #tpu.dot_dimension_numbers<[1], [0], [0], [1], [0, 0, 1, 1], [], []>} : vector<16x128xbf16>, vector<128x128xbf16>, vector<16x128xf32> -> vector<16x128xf32>
        %36 = arith.truncf %35 : vector<16x128xf32> to vector<16x128xbf16>
        %37 = arith.index_cast %1 : i32 to index
        %c0_20 = arith.constant 0 : index
        %38 = vector.load %arg8[%37, %c0_20] : memref<16x128xbf16, #tpu.memory_space<vmem>>, vector<16x128xbf16>
        tpu.vector_store %arg8[%37, %c0_20], %36 {strides = array<i32>} : memref<16x128xbf16, #tpu.memory_space<vmem>>, vector<16x128xbf16>,
      } else {
      }
      %c2_i32_14 = arith.constant 2 : i32
      %29 = arith.cmpi eq, %arg0, %c2_i32_14 : i32
      %30 = arith.extui %29 : i1 to i32
      %c0_i32_15 = arith.constant 0 : i32
      %31 = arith.cmpi ne, %30, %c0_i32_15 : i32
      scf.if %31 {
        %32 = arith.truncf %25 : vector<16x128xf32> to vector<16x128xbf16>
        %33 = arith.index_cast %1 : i32 to index
        %c0_16 = arith.constant 0 : index
        %34 = vector.load %arg6[%33, %c0_16] : memref<16x128xbf16, #tpu.memory_space<vmem>>, vector<16x128xbf16>
        tpu.vector_store %arg6[%33, %c0_16], %32 {strides = array<i32>} : memref<16x128xbf16, #tpu.memory_space<vmem>>, vector<16x128xbf16>,
      } else {
      }
    } else {
    }
    %c0_i32_3 = arith.constant 0 : i32
    %11 = arith.cmpi sgt, %arg0, %c0_i32_3 : i32
    %c0_i32_4 = arith.constant 0 : i32
    %12 = arith.cmpi eq, %5, %c0_i32_4 : i32
    %13 = arith.andi %11, %12 : i1
    %14 = arith.extui %13 : i1 to i32
    %c0_i32_5 = arith.constant 0 : i32
    %15 = arith.cmpi ne, %14, %c0_i32_5 : i32
    scf.if %15 {
      %16 = arith.index_cast %1 : i32 to index
      %c0 = arith.constant 0 : index
      %17 = vector.load %arg2[%16, %c0] : memref<16x16xbf16, #tpu.memory_space<vmem>>, vector<16x16xbf16>
      %c0_6 = arith.constant 0 : index
      %c0_7 = arith.constant 0 : index
      %18 = vector.load %arg8[%c0_6, %c0_7] : memref<16x128xbf16, #tpu.memory_space<vmem>>, vector<16x128xbf16>
      %cst = arith.constant dense<0.000000e+00> : vector<16x128xf32>
      %19 = tpu.matmul %17, %18, %cst {dimension_numbers = #tpu.dot_dimension_numbers<[1], [0], [0], [1], [0, 0, 1, 1], [], []>} : vector<16x16xbf16>, vector<16x128xbf16>, vector<16x128xf32> -> vector<16x128xf32>
      %c0_8 = arith.constant 0 : index
      %c0_9 = arith.constant 0 : index
      %c0_10 = arith.constant 0 : index
      %20 = vector.load %arg5[%c0_8, %c0_9, %c0_10] : memref<1x1x128xf32, #tpu.memory_space<vmem>>, vector<1x1x128xf32>
      %21 = vector.shape_cast %20 : vector<1x1x128xf32> to vector<1x128xf32>
      %22 = vector.broadcast %21 : vector<1x128xf32> to vector<16x128xf32>
      %23 = arith.addf %19, %22 : vector<16x128xf32>
      %cst_11 = arith.constant 0.000000e+00 : f32
      %24 = vector.broadcast %cst_11 : f32 to vector<16x128xf32>
      %25 = arith.maximumf %23, %24 : vector<16x128xf32>
      %c2_i32_12 = arith.constant 2 : i32
      %26 = arith.cmpi slt, %arg0, %c2_i32_12 : i32
      %27 = arith.extui %26 : i1 to i32
      %c0_i32_13 = arith.constant 0 : i32
      %28 = arith.cmpi ne, %27, %c0_i32_13 : i32
      scf.if %28 {
        %32 = arith.truncf %25 : vector<16x128xf32> to vector<16x128xbf16>
        %c0_16 = arith.constant 0 : index
        %c0_17 = arith.constant 0 : index
        %c0_18 = arith.constant 0 : index
        %33 = vector.load %arg4[%c0_16, %c0_17, %c0_18] : memref<1x128x128xbf16, #tpu.memory_space<vmem>>, vector<1x128x128xbf16>
        %34 = vector.shape_cast %33 : vector<1x128x128xbf16> to vector<128x128xbf16>
        %cst_19 = arith.constant dense<0.000000e+00> : vector<16x128xf32>
        %35 = tpu.matmul %32, %34, %cst_19 {dimension_numbers = #tpu.dot_dimension_numbers<[1], [0], [0], [1], [0, 0, 1, 1], [], []>} : vector<16x128xbf16>, vector<128x128xbf16>, vector<16x128xf32> -> vector<16x128xf32>
        %36 = arith.truncf %35 : vector<16x128xf32> to vector<16x128xbf16>
        %37 = arith.index_cast %1 : i32 to index
        %c0_20 = arith.constant 0 : index
        %38 = vector.load %arg7[%37, %c0_20] : memref<16x128xbf16, #tpu.memory_space<vmem>>, vector<16x128xbf16>
        tpu.vector_store %arg7[%37, %c0_20], %36 {strides = array<i32>} : memref<16x128xbf16, #tpu.memory_space<vmem>>, vector<16x128xbf16>,
      } else {
      }
      %c2_i32_14 = arith.constant 2 : i32
      %29 = arith.cmpi eq, %arg0, %c2_i32_14 : i32
      %30 = arith.extui %29 : i1 to i32
      %c0_i32_15 = arith.constant 0 : i32
      %31 = arith.cmpi ne, %30, %c0_i32_15 : i32
      scf.if %31 {
        %32 = arith.truncf %25 : vector<16x128xf32> to vector<16x128xbf16>
        %33 = arith.index_cast %1 : i32 to index
        %c0_16 = arith.constant 0 : index
        %34 = vector.load %arg6[%33, %c0_16] : memref<16x128xbf16, #tpu.memory_space<vmem>>, vector<16x128xbf16>
        tpu.vector_store %arg6[%33, %c0_16], %32 {strides = array<i32>} : memref<16x128xbf16, #tpu.memory_space<vmem>>, vector<16x128xbf16>,
      } else {
      }
    } else {
    }
    return
  }
  func.func @transform_0(%arg0: i32, %arg1: i32) -> (i32, i32) {
    %c0_i32 = arith.constant 0 : i32
    %c0_i32_0 = arith.constant 0 : i32
    %c0_i32_1 = arith.constant 0 : i32
    return %c0_i32, %c0_i32_0 : i32, i32
  }
  func.func @transform_1(%arg0: i32, %arg1: i32) -> (i32, i32) {
    %c0_i32 = arith.constant 0 : i32
    %c0_i32_0 = arith.constant 0 : i32
    %c0_i32_1 = arith.constant 0 : i32
    return %c0_i32, %c0_i32_0 : i32, i32
  }
  func.func @transform_2(%arg0: i32, %arg1: i32) -> (i32, i32, i32) {
    %c1_i32 = arith.constant 1 : i32
    %0 = arith.minsi %arg0, %c1_i32 : i32
    %c0_i32 = arith.constant 0 : i32
    %c0_i32_0 = arith.constant 0 : i32
    %c0_i32_1 = arith.constant 0 : i32
    return %0, %c0_i32, %c0_i32_0 : i32, i32, i32
  }
  func.func @transform_3(%arg0: i32, %arg1: i32) -> (i32, i32, i32) {
    %c1_i32 = arith.constant 1 : i32
    %0 = arith.subi %arg0, %c1_i32 : i32
    %c0_i32 = arith.constant 0 : i32
    %1 = arith.maxsi %0, %c0_i32 : i32
    %c0_i32_0 = arith.constant 0 : i32
    %c0_i32_1 = arith.constant 0 : i32
    %c0_i32_2 = arith.constant 0 : i32
    return %1, %c0_i32_0, %c0_i32_1 : i32, i32, i32
  }
  func.func @transform_4(%arg0: i32, %arg1: i32) -> (i32, i32) {
    %c0_i32 = arith.constant 0 : i32
    %c0_i32_0 = arith.constant 0 : i32
    %c0_i32_1 = arith.constant 0 : i32
    return %c0_i32, %c0_i32_0 : i32, i32
  }
}

</mosaic_0001>

<llo_original>
// kernel: tpu_custom_call.1
$region0: #{tpu_custom_call.1}
  #allocation0 [shape = 'u32[]', space=smem, size = 0x4, offset = 0x4, fixed_abs, tag = 'smem constant byte address 0x4 - core index']
  #allocation1 [shape = 'u32[144,128]{1,0:T(1,128)}', space=vmem, size = 0x12000, scoped, tag = 'internal scratch']
  #allocation2 [shape = 'bf16[16,128]{1,0:T(8,128)(2,1)}', space=vmem, size = 0x1000, scoped, tag = 'scratch operand']
  #allocation3 [shape = 'bf16[16,128]{1,0:T(8,128)(2,1)}', space=vmem, size = 0x1000, scoped, tag = 'scratch operand']
  %s0 = inlined_call_operand.hbm [shape: bf16[16,16], index: 0, kind: input, shape index: {}]
  %s1 = inlined_call_operand.hbm [shape: bf16[16,128], index: 1, kind: input, shape index: {}]
  %s2 = inlined_call_operand.hbm [shape: bf16[2,128,128], index: 2, kind: input, shape index: {}]
  %s3 = inlined_call_operand.vmem [shape: f32[2,1,128], index: 3, kind: input, shape index: {}]
  %s4 = inlined_call_operand.hbm [shape: bf16[16,128], index: 4, kind: output, shape index: {}]
  %s5 = sld [smem:[#allocation0]]
  $region89: #{tpu_custom_call.1} parent=0
    _
  %s7 = ssub.s32 1, %s5
  %s8 = scalar_select 0, %s7, %s5
  $region1: #{tpu_custom_call.1} parent=0
    #allocation4 [shape = 'u8[4096]{0}', space=vmem, size = 0x1000, scoped, tag = 'input window, operand 0, single buffered']
    #allocation5 [shape = 's32[2]{0}', space=sflag, size = 0x8, scoped, tag = 'scoped memory for tpu_custom_call.1']
    #allocation6 [shape = 's32[2]{0}', space=sflag, size = 0x8, scoped, tag = 'scoped memory for tpu_custom_call.1']
    #allocation7 [shape = 'u8[4096]{0}', space=vmem, size = 0x1000, scoped, tag = 'input window, operand 1, single buffered']
    #allocation8 [shape = 's32[1]{0}', space=sflag, size = 0x4, scoped, tag = 'scoped memory for tpu_custom_call.1']
    #allocation9 [shape = 'u8[65536]{0}', space=vmem, size = 0x10000, scoped, tag = 'input window, operand 2']
    #allocation10 [shape = 'u8[4096]{0}', space=vmem, size = 0x1000, scoped, tag = 'output window, operand 0, single buffered']
    %9 = vsyncpa [#allocation5], 0
    %10 = vsyncpa [#allocation8], 0
    %11 = vsyncpa [#allocation6], 0
    loop: start=0, step=1, limit=5
    $region2: #{tpu_custom_call.1} parent=1 // loop_pre_header
      _
    $region3: #{tpu_custom_call.1} parent=1 // loop_header
      %s13 = sphi 0, %s17
      %p14 = scmp.ge.s32.totalorder %s13, 5
      %s20 = sphi 0, %s32
      %s21 = sphi 0, %s28
      %s22 = sphi 0, %s20
      %s23 = sphi 0, %s21
      %s24 = sphi 0, %s22
      %s25 = sphi 0, %s23
      %s33 = sphi 0, %s33
      %s35 = sphi 0, %s33
      %s36 = sphi 0, %s35
      %s50 = sphi 0, %s36
      %s54 = sphi 0, %s54
      %s56 = sphi 0, %s54
      %s57 = sphi 0, %s56
      %s71 = sphi 0, %s57
      %s81 = sphi 0, %s83
      %s84 = sphi 0, %s81
      %s85 = sphi 0, %s84
      %s101 = sphi 0, %s85
      %s113 = sphi 0, %s115
      %s116 = sphi 0, %s113
      %s117 = sphi 0, %s116
      %s133 = sphi 0, %s117
      %s137 = sphi 0, %s137
      %s139 = sphi 0, %s137
      %s140 = sphi 0, %s139
      %s154 = sphi 0, %s140
    $region4: #{tpu_custom_call.1} parent=1 // loop_header_branch
      %16 = sbr.rel (%p14) target = $region8
    $region5: #{tpu_custom_call.1} parent=1 // loop_body
      %s18 = ssub.s32 %s13, 1
      %s19 = ssub.s32 %s13, 2
      %s26 = sadd.s32 1, %s21
      %p27 = scmp.ge.s32.totalorder %s26, 1
      %s28 = scalar_select %p27, 0, %s26
      %s29 = sadd.s32 1, %s20
      %s30 = scalar_select %p27, %s29, %s20
      %p31 = scmp.ge.s32.totalorder %s30, 3
      %s32 = scalar_select %p31, 0, %s30
      %s34 = sadd.s32 %s33, 1
      %p37 = scmp.eq.s32.totalorder %s13, 2
      %p38 = scmp.ne.s32.totalorder %s33, %s35
      %p39 = scmp.eq.s32.totalorder %s13, 0
      %p40 = por %p38, %p39
      %p41 = scmp.ne.s32.totalorder %s33, %s35
      %p42 = scmp.eq.s32.totalorder %s18, 2
      %p43 = por %p41, %p42
      %p44 = scmp.ne.s32.totalorder %s35, %s36
      %p45 = scmp.eq.s32.totalorder %s18, 0
      %p46 = por %p44, %p45
      %p47 = scmp.ne.s32.totalorder %s35, %s36
      %p48 = scmp.eq.s32.totalorder %s19, 2
      %p49 = por %p47, %p48
      %p51 = scmp.ne.s32.totalorder %s36, %s50
      %p52 = scmp.eq.s32.totalorder %s19, 0
      %p53 = por %p51, %p52
      %s55 = sadd.s32 %s54, 1
      %p58 = scmp.eq.s32.totalorder %s13, 2
      %p59 = scmp.ne.s32.totalorder %s54, %s56
      %p60 = scmp.eq.s32.totalorder %s13, 0
      %p61 = por %p59, %p60
      %p62 = scmp.ne.s32.totalorder %s54, %s56
      %p63 = scmp.eq.s32.totalorder %s18, 2
      %p64 = por %p62, %p63
      %p65 = scmp.ne.s32.totalorder %s56, %s57
      %p66 = scmp.eq.s32.totalorder %s18, 0
      %p67 = por %p65, %p66
      %p68 = scmp.ne.s32.totalorder %s56, %s57
      %p69 = scmp.eq.s32.totalorder %s19, 2
      %p70 = por %p68, %p69
      %p72 = scmp.ne.s32.totalorder %s57, %s71
      %p73 = scmp.eq.s32.totalorder %s19, 0
      %p74 = por %p72, %p73
      %p75 = scmp.lt.s32.totalorder %s20, 1
      %s76 = scalar_select %p75, %s20, 1
      %p77 = scmp.lt.s32.totalorder %s32, 1
      %s78 = scalar_select %p77, %s32, 1
      %s79 = ssub.s32 %s76, %s78
      %p80 = scmp.eq.s32.totalorder %s79, 0
      %s82 = sadd.s32 %s81, 1
      %s83 = scalar_select %p80, %s81, %s82
      %p86 = pneg %p80
      %p87 = scmp.eq.s32.totalorder %s13, 2
      %p88 = por %p86, %p87
      %p89 = scmp.ne.s32.totalorder %s81, %s84
      %p90 = scmp.eq.s32.totalorder %s13, 0
      %p91 = por %p89, %p90
      %p92 = scmp.ne.s32.totalorder %s81, %s84
      %p93 = scmp.eq.s32.totalorder %s18, 2
      %p94 = por %p92, %p93
      %p95 = scmp.ne.s32.totalorder %s84, %s85
      %p96 = scmp.eq.s32.totalorder %s18, 0
      %p97 = por %p95, %p96
      %p98 = scmp.ne.s32.totalorder %s84, %s85
      %p99 = scmp.eq.s32.totalorder %s19, 2
      %p100 = por %p98, %p99
      %p102 = scmp.ne.s32.totalorder %s85, %s101
      %p103 = scmp.eq.s32.totalorder %s19, 0
      %p104 = por %p102, %p103
      %s105 = ssub.s32 %s20, 1
      %p106 = scmp.gt.s32.totalorder %s105, 0
      %s107 = scalar_select %p106, %s105, 0
      %s108 = ssub.s32 %s32, 1
      %p109 = scmp.gt.s32.totalorder %s108, 0
      %s110 = scalar_select %p109, %s108, 0
      %s111 = ssub.s32 %s107, %s110
      %p112 = scmp.eq.s32.totalorder %s111, 0
      %s114 = sadd.s32 %s113, 1
      %s115 = scalar_select %p112, %s113, %s114
      %p118 = pneg %p112
      %p119 = scmp.eq.s32.totalorder %s13, 2
      %p120 = por %p118, %p119
      %p121 = scmp.ne.s32.totalorder %s113, %s116
      %p122 = scmp.eq.s32.totalorder %s13, 0
      %p123 = por %p121, %p122
      %p124 = scmp.ne.s32.totalorder %s113, %s116
      %p125 = scmp.eq.s32.totalorder %s18, 2
      %p126 = por %p124, %p125
      %p127 = scmp.ne.s32.totalorder %s116, %s117
      %p128 = scmp.eq.s32.totalorder %s18, 0
      %p129 = por %p127, %p128
      %p130 = scmp.ne.s32.totalorder %s116, %s117
      %p131 = scmp.eq.s32.totalorder %s19, 2
      %p132 = por %p130, %p131
      %p134 = scmp.ne.s32.totalorder %s117, %s133
      %p135 = scmp.eq.s32.totalorder %s19, 0
      %p136 = por %p134, %p135
      %s138 = sadd.s32 %s137, 1
      %p141 = scmp.eq.s32.totalorder %s13, 2
      %p142 = scmp.ne.s32.totalorder %s137, %s139
      %p143 = scmp.eq.s32.totalorder %s13, 0
      %p144 = por %p142, %p143
      %p145 = scmp.ne.s32.totalorder %s137, %s139
      %p146 = scmp.eq.s32.totalorder %s18, 2
      %p147 = por %p145, %p146
      %p148 = scmp.ne.s32.totalorder %s139, %s140
      %p149 = scmp.eq.s32.totalorder %s18, 0
      %p150 = por %p148, %p149
      %p151 = scmp.ne.s32.totalorder %s139, %s140
      %p152 = scmp.eq.s32.totalorder %s19, 2
      %p153 = por %p151, %p152
      %p155 = scmp.ne.s32.totalorder %s140, %s154
      %p156 = scmp.eq.s32.totalorder %s19, 0
      %p157 = por %p155, %p156
      %p158 = scmp.le.s32.totalorder 1, %s13
      %p159 = scmp.lt.s32.totalorder %s13, 4
      %p160 = pnand %p158, %p159
      %p161 = pneg %p160
      // Predicated region
      $region9: #{tpu_custom_call.1} parent=5 // pred_check
        _
      $region10: #{tpu_custom_call.1} parent=5 // pred_check_branch
        %163 = sbr.rel (%p160) target = $region12
      $region11: #{tpu_custom_call.1} parent=5 // pred_region
        %s164 = ssub.s32 %s13, 1
        // Predicated region
        $region13: #{tpu_custom_call.1} parent=11 // pred_check
          %p165 = pneg %p46
        $region14: #{tpu_custom_call.1} parent=11 // pred_check_branch
          %167 = sbr.rel (%p165) target = $region16
        $region15: #{tpu_custom_call.1} parent=11 // pred_region
          %s169 = ssub.s32 128, 128
          %170 = vsyncadd [#allocation5], %s169
          %s171 = sshll.u32 [#allocation4], 4
          %s172 = int_to_ptr.vmem [resolvable:$true] %s171
          %177 = dma.hbm_to_vmem [thread:$0]  %s0, 128, %s172, [#allocation5], 64, 64, 4
        $region16: #{tpu_custom_call.1} parent=11 // pred_fallthru
          _
        // Predicated region
        $region17: #{tpu_custom_call.1} parent=11 // pred_check
          %p178 = pneg %p67
        $region18: #{tpu_custom_call.1} parent=11 // pred_check_branch
          %180 = sbr.rel (%p178) target = $region20
        $region19: #{tpu_custom_call.1} parent=11 // pred_region
          %s182 = ssub.s32 128, 128
          %183 = vsyncadd [#allocation8], %s182
          %s184 = sshll.u32 [#allocation7], 4
          %s185 = int_to_ptr.vmem [resolvable:$true] %s184
          %190 = dma.hbm_to_vmem [thread:$0]  %s1, 128, %s185, [#allocation8], 64, 64, 4
        $region20: #{tpu_custom_call.1} parent=11 // pred_fallthru
          _
      $region12: #{tpu_custom_call.1} parent=5 // pred_fallthru
        _
      %p191 = scmp.lt.s32.totalorder %s13, 3
      // Predicated region
      $region21: #{tpu_custom_call.1} parent=5 // pred_check
        %p192 = pneg %p191
      $region22: #{tpu_custom_call.1} parent=5 // pred_check_branch
        %194 = sbr.rel (%p192) target = $region24
      $region23: #{tpu_custom_call.1} parent=5 // pred_region
        // Predicated region
        $region25: #{tpu_custom_call.1} parent=23 // pred_check
          %p195 = pneg %p91
        $region26: #{tpu_custom_call.1} parent=23 // pred_check_branch
          %197 = sbr.rel (%p195) target = $region28
        $region27: #{tpu_custom_call.1} parent=23 // pred_region
          %s198 = sand.u32 %s13, 1
          %s199 = scalar_lea.sflag [#allocation5], %s198
          %s200 = sand.u32 %s81, 1
          %s201 = smul.addr %s200, 64
          %s202 = scalar_lea.vmem [#allocation9], %s201
          %p203 = scmp.lt.s32.totalorder %s20, 1
          %s204 = scalar_select %p203, %s20, 1
          %s206 = ssub.s32 1024, 1024
          %207 = vsyncadd %s199, %s206
          %s208 = smul.addr %s204, 16
          %s209 = smul.addr %s208, 64
          %s210 = scalar_lea.hbm %s2, %s209
          %s211 = sshll.u32 %s202, 4
          %s212 = int_to_ptr.vmem [resolvable:$true] %s211
          %217 = dma.hbm_to_vmem [thread:$0]  %s210, 1024, %s212, %s199, 64, 64, 4
        $region28: #{tpu_custom_call.1} parent=23 // pred_fallthru
          _
        // Predicated region
        $region29: #{tpu_custom_call.1} parent=23 // pred_check
          %p218 = pneg %p123
        $region30: #{tpu_custom_call.1} parent=23 // pred_check_branch
          %220 = sbr.rel (%p218) target = $region32
        $region31: #{tpu_custom_call.1} parent=23 // pred_region
          %s221 = ssub.s32 %s20, 1
          %p222 = scmp.gt.s32.totalorder %s221, 0
          %s223 = scalar_select %p222, %s221, 0
          %p224 = scmp.lt.s32.totalorder %s223, 1
          %s225 = scalar_select %p224, %s223, 1
          %s226 = scalar_lea.vmem %s3, %s225
          %s227 = ssub.s32 %s20, 1
          %p228 = scmp.gt.s32.totalorder %s227, 0
          %s229 = scalar_select %p228, %s227, 0
        $region32: #{tpu_custom_call.1} parent=23 // pred_fallthru
          _
      $region24: #{tpu_custom_call.1} parent=5 // pred_fallthru
        _
      %p230 = scmp.le.s32.totalorder 1, %s13
      %p231 = scmp.lt.s32.totalorder %s13, 4
      %p232 = pnand %p230, %p231
      %p233 = pneg %p232
      // Predicated region
      $region33: #{tpu_custom_call.1} parent=5 // pred_check
        _
      $region34: #{tpu_custom_call.1} parent=5 // pred_check_branch
        %235 = sbr.rel (%p232) target = $region36
      $region35: #{tpu_custom_call.1} parent=5 // pred_region
        %s236 = ssub.s32 %s13, 1
        // Predicated region
        $region37: #{tpu_custom_call.1} parent=35 // pred_check
          %p237 = pneg %p46
        $region38: #{tpu_custom_call.1} parent=35 // pred_check_branch
          %239 = sbr.rel (%p237) target = $region40
        $region39: #{tpu_custom_call.1} parent=35 // pred_region
          %240 = dma.done [#allocation5], 128
        $region40: #{tpu_custom_call.1} parent=35 // pred_fallthru
          _
        // Predicated region
        $region41: #{tpu_custom_call.1} parent=35 // pred_check
          %p241 = pneg %p67
        $region42: #{tpu_custom_call.1} parent=35 // pred_check_branch
          %243 = sbr.rel (%p241) target = $region44
        $region43: #{tpu_custom_call.1} parent=35 // pred_region
          %244 = dma.done [#allocation8], 128
        $region44: #{tpu_custom_call.1} parent=35 // pred_fallthru
          _
        %s245 = sand.u32 %s18, 1
        %s246 = scalar_lea.sflag [#allocation5], %s245
        %s247 = sand.u32 %s84, 1
        %s248 = smul.addr %s247, 64
        %s249 = scalar_lea.vmem [#allocation9], %s248
        // Predicated region
        $region45: #{tpu_custom_call.1} parent=35 // pred_check
          %p250 = pneg %p97
        $region46: #{tpu_custom_call.1} parent=35 // pred_check_branch
          %252 = sbr.rel (%p250) target = $region48
        $region47: #{tpu_custom_call.1} parent=35 // pred_region
          %253 = dma.done %s246, 1024
        $region48: #{tpu_custom_call.1} parent=35 // pred_fallthru
          _
        %p254 = pneg %p46
        %p255 = pneg %p43
        %p256 = pneg %p67
        %p257 = pneg %p64
        %s258 = sand.u32 %s18, 1
        %s259 = scalar_lea.sflag [#allocation5], %s258
        %s260 = sand.u32 %s84, 1
        %s261 = smul.addr %s260, 64
        %s262 = scalar_lea.vmem [#allocation9], %s261
        %p263 = pneg %p97
        %p264 = pneg %p94
        %s265 = ssub.s32 %s22, 1
        %p266 = scmp.gt.s32.totalorder %s265, 0
        %s267 = scalar_select %p266, %s265, 0
        %p268 = scmp.lt.s32.totalorder %s267, 1
        %s269 = scalar_select %p268, %s267, 1
        %s270 = scalar_lea.vmem %s3, %s269
        %p271 = pneg %p129
        %p272 = pneg %p126
        %p273 = pneg %p150
        %p274 = pneg %p147
        %p275 = scmp.lt.s32.totalorder %s22, 1
        %s276 = scalar_select %p275, %s22, 1
        %s277 = ssub.s32 %s22, 1
        %p278 = scmp.gt.s32.totalorder %s277, 0
        %s279 = scalar_select %p278, %s277, 0
        %p280 = scmp.lt.s32.totalorder %s279, 1
        %s281 = scalar_select %p280, %s279, 1
        %s282 = scalar_lea.vmem %s3, %s281
        %s283 = ssub.s32 %s22, 1
        %p284 = scmp.gt.s32.totalorder %s283, 0
        %s285 = scalar_select %p284, %s283, 0
        %s287 = smul.u32 %s23, 16
        %p288 = scmp.eq.s32.totalorder %s22, 0
        // Predicated region
        $region49: #{tpu_custom_call.1} parent=35 // pred_check
          %p289 = pneg %p288
        $region50: #{tpu_custom_call.1} parent=35 // pred_check_branch
          %291 = sbr.rel (%p289) target = $region52
        $region51: #{tpu_custom_call.1} parent=35 // pred_region
          %s292 = sshra.s32 %s287, 3
          %s293 = sand.u32 %s287, 7
          %s294 = smul.addr %s292, 4
          %s295 = scalar_lea.vmem [#allocation7], %s294
          %v296 = vld [vmem:[%s295] sm:$0xf]
          %v297 = vld [vmem:[%s295 + $0x4] sm:$0xf]
          %v298 = vld [vmem:[%s249] sm:$0xf]
          %v299 = vld [vmem:[%s249 + $0x4] sm:$0xf]
          %v300 = vld [vmem:[%s249 + $0x8] sm:$0xf]
          %v301 = vld [vmem:[%s249 + $0xc] sm:$0xf]
          %v302 = vld [vmem:[%s249 + $0x10] sm:$0xf]
          %v303 = vld [vmem:[%s249 + $0x14] sm:$0xf]
          %v304 = vld [vmem:[%s249 + $0x18] sm:$0xf]
          %v305 = vld [vmem:[%s249 + $0x1c] sm:$0xf]
          %v306 = vld [vmem:[%s249 + $0x20] sm:$0xf]
          %v307 = vld [vmem:[%s249 + $0x24] sm:$0xf]
          %v308 = vld [vmem:[%s249 + $0x28] sm:$0xf]
          %v309 = vld [vmem:[%s249 + $0x2c] sm:$0xf]
          %v310 = vld [vmem:[%s249 + $0x30] sm:$0xf]
          %v311 = vld [vmem:[%s249 + $0x34] sm:$0xf]
          %v312 = vld [vmem:[%s249 + $0x38] sm:$0xf]
          %v313 = vld [vmem:[%s249 + $0x3c] sm:$0xf]
          %v316 = vunpack.c.l.b16 %v296
          %v317 = vunpack.c.l.b16 %v297
          %v318 = vpack.c.b16 %v317, %v316
          %v336 = vunpack.c.l.b16 %v298
          %v337 = vunpack.c.l.b16 %v299
          %v338 = vunpack.c.l.b16 %v300
          %v339 = vunpack.c.l.b16 %v301
          %v340 = vunpack.c.l.b16 %v302
          %v341 = vunpack.c.l.b16 %v303
          %v342 = vunpack.c.l.b16 %v304
          %v343 = vunpack.c.l.b16 %v305
          %v344 = vunpack.c.l.b16 %v306
          %v345 = vunpack.c.l.b16 %v307
          %v346 = vunpack.c.l.b16 %v308
          %v347 = vunpack.c.l.b16 %v309
          %v348 = vunpack.c.l.b16 %v310
          %v349 = vunpack.c.l.b16 %v311
          %v350 = vunpack.c.l.b16 %v312
          %v351 = vunpack.c.l.b16 %v313
          %v352 = vpack.c.b16 %v337, %v336
          %v353 = vpack.c.b16 %v339, %v338
          %v354 = vpack.c.b16 %v341, %v340
          %v355 = vpack.c.b16 %v343, %v342
          %v356 = vpack.c.b16 %v345, %v344
          %v357 = vpack.c.b16 %v347, %v346
          %v358 = vpack.c.b16 %v349, %v348
          %v359 = vpack.c.b16 %v351, %v350
          %368 = vmatprep.subr.bf16.mxu0 0
          %369 = vmatpush1.bf16.msra.mxu0 %v359
          %370 = vmatprep.subr.bf16.mxu0 0
          %371 = vmatpush1.bf16.msra.mxu0 %v358
          %372 = vmatprep.subr.bf16.mxu0 0
          %373 = vmatpush1.bf16.msra.mxu0 %v357
          %374 = vmatprep.subr.bf16.mxu0 0
          %375 = vmatpush1.bf16.msra.mxu0 %v356
          %376 = vmatprep.subr.bf16.mxu0 0
          %377 = vmatpush1.bf16.msra.mxu0 %v355
          %378 = vmatprep.subr.bf16.mxu0 0
          %379 = vmatpush1.bf16.msra.mxu0 %v354
          %380 = vmatprep.subr.bf16.mxu0 0
          %381 = vmatpush1.bf16.msra.mxu0 %v353
          %382 = vmatprep.subr.bf16.mxu0 0
          %383 = vmatpush1.bf16.msra.mxu0 %v352
          %384 = vmatprep.subr.bf16.mxu0 0
          %385 = vmatpush2.bf16.msra.mxu0 0
          %386 = vmatprep.subr.bf16.mxu0 0
          %387 = vmatpush2.bf16.msra.mxu0 0
          %388 = vmatprep.subr.bf16.mxu0 0
          %389 = vmatpush2.bf16.msra.mxu0 0
          %390 = vmatprep.subr.bf16.mxu0 0
          %391 = vmatpush2.bf16.msra.mxu0 0
          %392 = vmatprep.subr.bf16.mxu0 0
          %393 = vmatpush2.bf16.msra.mxu0 0
          %394 = vmatprep.subr.bf16.mxu0 0
          %395 = vmatpush2.bf16.msra.mxu0 0
          %396 = vmatprep.subr.bf16.mxu0 0
          %397 = vmatpush2.bf16.msra.mxu0 0
          %398 = vmatprep.subr.bf16.mxu0 0
          %399 = vmatpush2.bf16.msra.mxu0 0
          %400 = vmatprep.mubr.bf16.mxu0 0
          %401 = vmatmul.mubr.bf16.gmra.mxu0 %v318
          %v402 = vpop.f32.mrf.mxu0
          %v403 = vadd.f32 0.0, %v402
          %v404 = vpop.f32.mrf.mxu0
          %v405 = vpop.f32.mrf.mxu0
          %v406 = vadd.f32 0.0, %v405
          %v407 = vpop.f32.mrf.mxu0
          %408 = vdwg.mxu0
          %v409 = vpack.c.bf16 %v406, %v403
          %v411 = vunpack.c.l.b16 %v409
          %v412 = vunpack.c.h.b16 %v409
          %v413 = vpack.c.b16 %v411, %v411
          %v414 = vpack.c.b16 %v412, %v412
          %s417 = smul.addr %s292, 4
          %s418 = scalar_lea.vmem [#allocation2], %s417
          %419 = vst [vmem:[%s418] sm:$0xf] %v413
          %420 = vst [vmem:[%s418 + $0x4] sm:$0xf] %v414
        $region52: #{tpu_custom_call.1} parent=35 // pred_fallthru
          _
        %p421 = scmp.lt.s32.totalorder %s22, 0
        %s422 = ssub.s32 0, %s22
        %s423 = scalar_select %p421, %s422, %s22
        %s424 = sand.u32 %s423, 1
        %s425 = ssub.s32 0, %s424
        %s426 = scalar_select %p421, %s425, %s424
        %p427 = scmp.gt.s32.totalorder %s22, 0
        %p428 = scmp.eq.s32.totalorder %s426, 1
        %p429 = pnand %p427, %p428
        %p430 = pneg %p429
        // Predicated region
        $region53: #{tpu_custom_call.1} parent=35 // pred_check
          _
        $region54: #{tpu_custom_call.1} parent=35 // pred_check_branch
          %432 = sbr.rel (%p429) target = $region56
        $region55: #{tpu_custom_call.1} parent=35 // pred_region
          %s433 = sshra.s32 %s287, 3
          %s434 = sand.u32 %s287, 7
          %s435 = smul.addr %s433, 4
          %s436 = scalar_lea.vmem [#allocation4], %s435
          %v437 = vld [vmem:[%s436] sm:$0xf]
          %v438 = vld [vmem:[%s436 + $0x4] sm:$0xf]
          %v439 = vld [vmem:[#allocation2] sm:$0xf]
          %v440 = vld [vmem:[#allocation2 + $0x4] sm:$0xf]
          %v441 = vld [vmem:[%s282] sm:$0x1]
          %v443 = vlaneseq
          %v444 = vshrl.u32 %v443, 7
          %v445 = vsub.s32 0, %v444
          %v446 = vrot.slane %v441, %v445
          %v450 = vunpack.c.l.b16 %v437
          %v451 = vunpack.c.l.b16 %v438
          %v452 = vpack.c.b16 %v451, %v450
          %v455 = vunpack.c.l.b16 %v439
          %v456 = vunpack.c.l.b16 %v440
          %v457 = vpack.c.b16 %v456, %v455
          %vm459 = vcmask 130048
          %v461 = vsel %vm459, %v452, 0
          %463 = vmatprep.subr.bf16.mxu0 0
          %464 = vmatpush1.bf16.msra.mxu0 0
          %465 = vmatprep.subr.bf16.mxu0 0
          %466 = vmatpush1.bf16.msra.mxu0 0
          %467 = vmatprep.subr.bf16.mxu0 0
          %468 = vmatpush1.bf16.msra.mxu0 0
          %469 = vmatprep.subr.bf16.mxu0 0
          %470 = vmatpush1.bf16.msra.mxu0 0
          %471 = vmatprep.subr.bf16.mxu0 0
          %472 = vmatpush1.bf16.msra.mxu0 0
          %473 = vmatprep.subr.bf16.mxu0 0
          %474 = vmatpush1.bf16.msra.mxu0 0
          %475 = vmatprep.subr.bf16.mxu0 0
          %476 = vmatpush1.bf16.msra.mxu0 0
          %477 = vmatprep.subr.bf16.mxu0 0
          %478 = vmatpush1.bf16.msra.mxu0 %v457
          %479 = vmatprep.subr.bf16.mxu0 0
          %480 = vmatpush2.bf16.msra.mxu0 0
          %481 = vmatprep.subr.bf16.mxu0 0
          %482 = vmatpush2.bf16.msra.mxu0 0
          %483 = vmatprep.subr.bf16.mxu0 0
          %484 = vmatpush2.bf16.msra.mxu0 0
          %485 = vmatprep.subr.bf16.mxu0 0
          %486 = vmatpush2.bf16.msra.mxu0 0
          %487 = vmatprep.subr.bf16.mxu0 0
          %488 = vmatpush2.bf16.msra.mxu0 0
          %489 = vmatprep.subr.bf16.mxu0 0
          %490 = vmatpush2.bf16.msra.mxu0 0
          %491 = vmatprep.subr.bf16.mxu0 0
          %492 = vmatpush2.bf16.msra.mxu0 0
          %493 = vmatprep.subr.bf16.mxu0 0
          %494 = vmatpush2.bf16.msra.mxu0 0
          %495 = vmatprep.mubr.bf16.mxu0 0
          %496 = vmatmul.mubr.bf16.gmra.mxu0 %v461
          %v497 = vpop.f32.mrf.mxu0
          %v498 = vadd.f32 %v446, %v497
          %v499 = vpop.f32.mrf.mxu0
          %v500 = vpop.f32.mrf.mxu0
          %v501 = vadd.f32 %v446, %v500
          %v502 = vpop.f32.mrf.mxu0
          %503 = vdwg.mxu0
          %v504 = vmax.f32 %v498, 0.0
          %v505 = vmax.f32 %v501, 0.0
          %p506 = scmp.lt.s32.totalorder %s22, 2
          // Predicated region
          $region57: #{tpu_custom_call.1} parent=55 // pred_check
            %p507 = pneg %p506
          $region58: #{tpu_custom_call.1} parent=55 // pred_check_branch
            %509 = sbr.rel (%p507) target = $region60
          $region59: #{tpu_custom_call.1} parent=55 // pred_region
            %v510 = vpack.c.bf16 %v505, %v504
            %v511 = vld [vmem:[%s249] sm:$0xf]
            %v512 = vld [vmem:[%s249 + $0x4] sm:$0xf]
            %v513 = vld [vmem:[%s249 + $0x8] sm:$0xf]
            %v514 = vld [vmem:[%s249 + $0xc] sm:$0xf]
            %v515 = vld [vmem:[%s249 + $0x10] sm:$0xf]
            %v516 = vld [vmem:[%s249 + $0x14] sm:$0xf]
            %v517 = vld [vmem:[%s249 + $0x18] sm:$0xf]
            %v518 = vld [vmem:[%s249 + $0x1c] sm:$0xf]
            %v519 = vld [vmem:[%s249 + $0x20] sm:$0xf]
            %v520 = vld [vmem:[%s249 + $0x24] sm:$0xf]
            %v521 = vld [vmem:[%s249 + $0x28] sm:$0xf]
            %v522 = vld [vmem:[%s249 + $0x2c] sm:$0xf]
            %v523 = vld [vmem:[%s249 + $0x30] sm:$0xf]
            %v524 = vld [vmem:[%s249 + $0x34] sm:$0xf]
            %v525 = vld [vmem:[%s249 + $0x38] sm:$0xf]
            %v526 = vld [vmem:[%s249 + $0x3c] sm:$0xf]
            %v543 = vunpack.c.l.b16 %v511
            %v544 = vunpack.c.l.b16 %v512
            %v545 = vunpack.c.l.b16 %v513
            %v546 = vunpack.c.l.b16 %v514
            %v547 = vunpack.c.l.b16 %v515
            %v548 = vunpack.c.l.b16 %v516
            %v549 = vunpack.c.l.b16 %v517
            %v550 = vunpack.c.l.b16 %v518
            %v551 = vunpack.c.l.b16 %v519
            %v552 = vunpack.c.l.b16 %v520
            %v553 = vunpack.c.l.b16 %v521
            %v554 = vunpack.c.l.b16 %v522
            %v555 = vunpack.c.l.b16 %v523
            %v556 = vunpack.c.l.b16 %v524
            %v557 = vunpack.c.l.b16 %v525
            %v558 = vunpack.c.l.b16 %v526
            %v559 = vpack.c.b16 %v544, %v543
            %v560 = vpack.c.b16 %v546, %v545
            %v561 = vpack.c.b16 %v548, %v547
            %v562 = vpack.c.b16 %v550, %v549
            %v563 = vpack.c.b16 %v552, %v551
            %v564 = vpack.c.b16 %v554, %v553
            %v565 = vpack.c.b16 %v556, %v555
            %v566 = vpack.c.b16 %v558, %v557
            %575 = vmatprep.subr.bf16.mxu0 0
            %576 = vmatpush1.bf16.msra.mxu0 %v566
            %577 = vmatprep.subr.bf16.mxu0 0
            %578 = vmatpush1.bf16.msra.mxu0 %v565
            %579 = vmatprep.subr.bf16.mxu0 0
            %580 = vmatpush1.bf16.msra.mxu0 %v564
            %581 = vmatprep.subr.bf16.mxu0 0
            %582 = vmatpush1.bf16.msra.mxu0 %v563
            %583 = vmatprep.subr.bf16.mxu0 0
            %584 = vmatpush1.bf16.msra.mxu0 %v562
            %585 = vmatprep.subr.bf16.mxu0 0
            %586 = vmatpush1.bf16.msra.mxu0 %v561
            %587 = vmatprep.subr.bf16.mxu0 0
            %588 = vmatpush1.bf16.msra.mxu0 %v560
            %589 = vmatprep.subr.bf16.mxu0 0
            %590 = vmatpush1.bf16.msra.mxu0 %v559
            %591 = vmatprep.subr.bf16.mxu0 0
            %592 = vmatpush2.bf16.msra.mxu0 0
            %593 = vmatprep.subr.bf16.mxu0 0
            %594 = vmatpush2.bf16.msra.mxu0 0
            %595 = vmatprep.subr.bf16.mxu0 0
            %596 = vmatpush2.bf16.msra.mxu0 0
            %597 = vmatprep.subr.bf16.mxu0 0
            %598 = vmatpush2.bf16.msra.mxu0 0
            %599 = vmatprep.subr.bf16.mxu0 0
            %600 = vmatpush2.bf16.msra.mxu0 0
            %601 = vmatprep.subr.bf16.mxu0 0
            %602 = vmatpush2.bf16.msra.mxu0 0
            %603 = vmatprep.subr.bf16.mxu0 0
            %604 = vmatpush2.bf16.msra.mxu0 0
            %605 = vmatprep.subr.bf16.mxu0 0
            %606 = vmatpush2.bf16.msra.mxu0 0
            %607 = vmatprep.mubr.bf16.mxu0 0
            %608 = vmatmul.mubr.bf16.gmra.mxu0 %v510
            %v609 = vpop.f32.mrf.mxu0
            %v610 = vadd.f32 0.0, %v609
            %v611 = vpop.f32.mrf.mxu0
            %v612 = vpop.f32.mrf.mxu0
            %v613 = vadd.f32 0.0, %v612
            %v614 = vpop.f32.mrf.mxu0
            %615 = vdwg.mxu0
            %v616 = vpack.c.bf16 %v613, %v610
            %v618 = vunpack.c.l.b16 %v616
            %v619 = vunpack.c.h.b16 %v616
            %v620 = vpack.c.b16 %v618, %v618
            %v621 = vpack.c.b16 %v619, %v619
            %s624 = smul.addr %s433, 4
            %s625 = scalar_lea.vmem [#allocation3], %s624
            %626 = vst [vmem:[%s625] sm:$0xf] %v620
            %627 = vst [vmem:[%s625 + $0x4] sm:$0xf] %v621
          $region60: #{tpu_custom_call.1} parent=55 // pred_fallthru
            _
          %p628 = scmp.eq.s32.totalorder %s22, 2
          // Predicated region
          $region61: #{tpu_custom_call.1} parent=55 // pred_check
            %p629 = pneg %p628
          $region62: #{tpu_custom_call.1} parent=55 // pred_check_branch
            %631 = sbr.rel (%p629) target = $region64
          $region63: #{tpu_custom_call.1} parent=55 // pred_region
            %v632 = vpack.c.bf16 %v505, %v504
            %v634 = vunpack.c.l.b16 %v632
            %v635 = vunpack.c.h.b16 %v632
            %v636 = vpack.c.b16 %v634, %v634
            %v637 = vpack.c.b16 %v635, %v635
            %s640 = smul.addr %s433, 4
            %s641 = scalar_lea.vmem [#allocation10], %s640
            %642 = vst [vmem:[%s641] sm:$0xf] %v636
            %643 = vst [vmem:[%s641 + $0x4] sm:$0xf] %v637
          $region64: #{tpu_custom_call.1} parent=55 // pred_fallthru
            _
        $region56: #{tpu_custom_call.1} parent=35 // pred_fallthru
          _
        %p644 = scmp.eq.s32.totalorder %s426, 0
        %p645 = pnand %p427, %p644
        %p646 = pneg %p645
        // Predicated region
        $region65: #{tpu_custom_call.1} parent=35 // pred_check
          _
        $region66: #{tpu_custom_call.1} parent=35 // pred_check_branch
          %648 = sbr.rel (%p645) target = $region68
        $region67: #{tpu_custom_call.1} parent=35 // pred_region
          %s649 = sshra.s32 %s287, 3
          %s650 = sand.u32 %s287, 7
          %s651 = smul.addr %s649, 4
          %s652 = scalar_lea.vmem [#allocation4], %s651
          %v653 = vld [vmem:[%s652] sm:$0xf]
          %v654 = vld [vmem:[%s652 + $0x4] sm:$0xf]
          %v655 = vld [vmem:[#allocation3] sm:$0xf]
          %v656 = vld [vmem:[#allocation3 + $0x4] sm:$0xf]
          %v657 = vld [vmem:[%s282] sm:$0x1]
          %v659 = vlaneseq
          %v660 = vshrl.u32 %v659, 7
          %v661 = vsub.s32 0, %v660
          %v662 = vrot.slane %v657, %v661
          %v666 = vunpack.c.l.b16 %v653
          %v667 = vunpack.c.l.b16 %v654
          %v668 = vpack.c.b16 %v667, %v666
          %v671 = vunpack.c.l.b16 %v655
          %v672 = vunpack.c.l.b16 %v656
          %v673 = vpack.c.b16 %v672, %v671
          %vm675 = vcmask 130048
          %v677 = vsel %vm675, %v668, 0
          %679 = vmatprep.subr.bf16.mxu0 0
          %680 = vmatpush1.bf16.msra.mxu0 0
          %681 = vmatprep.subr.bf16.mxu0 0
          %682 = vmatpush1.bf16.msra.mxu0 0
          %683 = vmatprep.subr.bf16.mxu0 0
          %684 = vmatpush1.bf16.msra.mxu0 0
          %685 = vmatprep.subr.bf16.mxu0 0
          %686 = vmatpush1.bf16.msra.mxu0 0
          %687 = vmatprep.subr.bf16.mxu0 0
          %688 = vmatpush1.bf16.msra.mxu0 0
          %689 = vmatprep.subr.bf16.mxu0 0
          %690 = vmatpush1.bf16.msra.mxu0 0
          %691 = vmatprep.subr.bf16.mxu0 0
          %692 = vmatpush1.bf16.msra.mxu0 0
          %693 = vmatprep.subr.bf16.mxu0 0
          %694 = vmatpush1.bf16.msra.mxu0 %v673
          %695 = vmatprep.subr.bf16.mxu0 0
          %696 = vmatpush2.bf16.msra.mxu0 0
          %697 = vmatprep.subr.bf16.mxu0 0
          %698 = vmatpush2.bf16.msra.mxu0 0
          %699 = vmatprep.subr.bf16.mxu0 0
          %700 = vmatpush2.bf16.msra.mxu0 0
          %701 = vmatprep.subr.bf16.mxu0 0
          %702 = vmatpush2.bf16.msra.mxu0 0
          %703 = vmatprep.subr.bf16.mxu0 0
          %704 = vmatpush2.bf16.msra.mxu0 0
          %705 = vmatprep.subr.bf16.mxu0 0
          %706 = vmatpush2.bf16.msra.mxu0 0
          %707 = vmatprep.subr.bf16.mxu0 0
          %708 = vmatpush2.bf16.msra.mxu0 0
          %709 = vmatprep.subr.bf16.mxu0 0
          %710 = vmatpush2.bf16.msra.mxu0 0
          %711 = vmatprep.mubr.bf16.mxu0 0
          %712 = vmatmul.mubr.bf16.gmra.mxu0 %v677
          %v713 = vpop.f32.mrf.mxu0
          %v714 = vadd.f32 %v662, %v713
          %v715 = vpop.f32.mrf.mxu0
          %v716 = vpop.f32.mrf.mxu0
          %v717 = vadd.f32 %v662, %v716
          %v718 = vpop.f32.mrf.mxu0
          %719 = vdwg.mxu0
          %v720 = vmax.f32 %v714, 0.0
          %v721 = vmax.f32 %v717, 0.0
          %p722 = scmp.lt.s32.totalorder %s22, 2
          // Predicated region
          $region69: #{tpu_custom_call.1} parent=67 // pred_check
            %p723 = pneg %p722
          $region70: #{tpu_custom_call.1} parent=67 // pred_check_branch
            %725 = sbr.rel (%p723) target = $region72
          $region71: #{tpu_custom_call.1} parent=67 // pred_region
            %v726 = vpack.c.bf16 %v721, %v720
            %v727 = vld [vmem:[%s249] sm:$0xf]
            %v728 = vld [vmem:[%s249 + $0x4] sm:$0xf]
            %v729 = vld [vmem:[%s249 + $0x8] sm:$0xf]
            %v730 = vld [vmem:[%s249 + $0xc] sm:$0xf]
            %v731 = vld [vmem:[%s249 + $0x10] sm:$0xf]
            %v732 = vld [vmem:[%s249 + $0x14] sm:$0xf]
            %v733 = vld [vmem:[%s249 + $0x18] sm:$0xf]
            %v734 = vld [vmem:[%s249 + $0x1c] sm:$0xf]
            %v735 = vld [vmem:[%s249 + $0x20] sm:$0xf]
            %v736 = vld [vmem:[%s249 + $0x24] sm:$0xf]
            %v737 = vld [vmem:[%s249 + $0x28] sm:$0xf]
            %v738 = vld [vmem:[%s249 + $0x2c] sm:$0xf]
            %v739 = vld [vmem:[%s249 + $0x30] sm:$0xf]
            %v740 = vld [vmem:[%s249 + $0x34] sm:$0xf]
            %v741 = vld [vmem:[%s249 + $0x38] sm:$0xf]
            %v742 = vld [vmem:[%s249 + $0x3c] sm:$0xf]
            %v759 = vunpack.c.l.b16 %v727
            %v760 = vunpack.c.l.b16 %v728
            %v761 = vunpack.c.l.b16 %v729
            %v762 = vunpack.c.l.b16 %v730
            %v763 = vunpack.c.l.b16 %v731
            %v764 = vunpack.c.l.b16 %v732
            %v765 = vunpack.c.l.b16 %v733
            %v766 = vunpack.c.l.b16 %v734
            %v767 = vunpack.c.l.b16 %v735
            %v768 = vunpack.c.l.b16 %v736
            %v769 = vunpack.c.l.b16 %v737
            %v770 = vunpack.c.l.b16 %v738
            %v771 = vunpack.c.l.b16 %v739
            %v772 = vunpack.c.l.b16 %v740
            %v773 = vunpack.c.l.b16 %v741
            %v774 = vunpack.c.l.b16 %v742
            %v775 = vpack.c.b16 %v760, %v759
            %v776 = vpack.c.b16 %v762, %v761
            %v777 = vpack.c.b16 %v764, %v763
            %v778 = vpack.c.b16 %v766, %v765
            %v779 = vpack.c.b16 %v768, %v767
            %v780 = vpack.c.b16 %v770, %v769
            %v781 = vpack.c.b16 %v772, %v771
            %v782 = vpack.c.b16 %v774, %v773
            %791 = vmatprep.subr.bf16.mxu0 0
            %792 = vmatpush1.bf16.msra.mxu0 %v782
            %793 = vmatprep.subr.bf16.mxu0 0
            %794 = vmatpush1.bf16.msra.mxu0 %v781
            %795 = vmatprep.subr.bf16.mxu0 0
            %796 = vmatpush1.bf16.msra.mxu0 %v780
            %797 = vmatprep.subr.bf16.mxu0 0
            %798 = vmatpush1.bf16.msra.mxu0 %v779
            %799 = vmatprep.subr.bf16.mxu0 0
            %800 = vmatpush1.bf16.msra.mxu0 %v778
            %801 = vmatprep.subr.bf16.mxu0 0
            %802 = vmatpush1.bf16.msra.mxu0 %v777
            %803 = vmatprep.subr.bf16.mxu0 0
            %804 = vmatpush1.bf16.msra.mxu0 %v776
            %805 = vmatprep.subr.bf16.mxu0 0
            %806 = vmatpush1.bf16.msra.mxu0 %v775
            %807 = vmatprep.subr.bf16.mxu0 0
            %808 = vmatpush2.bf16.msra.mxu0 0
            %809 = vmatprep.subr.bf16.mxu0 0
            %810 = vmatpush2.bf16.msra.mxu0 0
            %811 = vmatprep.subr.bf16.mxu0 0
            %812 = vmatpush2.bf16.msra.mxu0 0
            %813 = vmatprep.subr.bf16.mxu0 0
            %814 = vmatpush2.bf16.msra.mxu0 0
            %815 = vmatprep.subr.bf16.mxu0 0
            %816 = vmatpush2.bf16.msra.mxu0 0
            %817 = vmatprep.subr.bf16.mxu0 0
            %818 = vmatpush2.bf16.msra.mxu0 0
            %819 = vmatprep.subr.bf16.mxu0 0
            %820 = vmatpush2.bf16.msra.mxu0 0
            %821 = vmatprep.subr.bf16.mxu0 0
            %822 = vmatpush2.bf16.msra.mxu0 0
            %823 = vmatprep.mubr.bf16.mxu0 0
            %824 = vmatmul.mubr.bf16.gmra.mxu0 %v726
            %v825 = vpop.f32.mrf.mxu0
            %v826 = vadd.f32 0.0, %v825
            %v827 = vpop.f32.mrf.mxu0
            %v828 = vpop.f32.mrf.mxu0
            %v829 = vadd.f32 0.0, %v828
            %v830 = vpop.f32.mrf.mxu0
            %831 = vdwg.mxu0
            %v832 = vpack.c.bf16 %v829, %v826
            %v834 = vunpack.c.l.b16 %v832
            %v835 = vunpack.c.h.b16 %v832
            %v836 = vpack.c.b16 %v834, %v834
            %v837 = vpack.c.b16 %v835, %v835
            %s840 = smul.addr %s649, 4
            %s841 = scalar_lea.vmem [#allocation2], %s840
            %842 = vst [vmem:[%s841] sm:$0xf] %v836
            %843 = vst [vmem:[%s841 + $0x4] sm:$0xf] %v837
          $region72: #{tpu_custom_call.1} parent=67 // pred_fallthru
            _
          %p844 = scmp.eq.s32.totalorder %s22, 2
          // Predicated region
          $region73: #{tpu_custom_call.1} parent=67 // pred_check
            %p845 = pneg %p844
          $region74: #{tpu_custom_call.1} parent=67 // pred_check_branch
            %847 = sbr.rel (%p845) target = $region76
          $region75: #{tpu_custom_call.1} parent=67 // pred_region
            %v848 = vpack.c.bf16 %v721, %v720
            %v850 = vunpack.c.l.b16 %v848
            %v851 = vunpack.c.h.b16 %v848
            %v852 = vpack.c.b16 %v850, %v850
            %v853 = vpack.c.b16 %v851, %v851
            %s856 = smul.addr %s649, 4
            %s857 = scalar_lea.vmem [#allocation10], %s856
            %858 = vst [vmem:[%s857] sm:$0xf] %v852
            %859 = vst [vmem:[%s857 + $0x4] sm:$0xf] %v853
          $region76: #{tpu_custom_call.1} parent=67 // pred_fallthru
            _
        $region68: #{tpu_custom_call.1} parent=35 // pred_fallthru
          _
        // Predicated region
        $region77: #{tpu_custom_call.1} parent=35 // pred_check
          %p860 = pneg %p147
        $region78: #{tpu_custom_call.1} parent=35 // pred_check_branch
          %862 = sbr.rel (%p860) target = $region80
        $region79: #{tpu_custom_call.1} parent=35 // pred_region
          %s864 = ssub.s32 128, 128
          %865 = vsyncadd [#allocation6], %s864
          %s866 = sshll.u32 [#allocation10], 4
          %s867 = int_to_ptr.vmem [resolvable:$true] %s866
          %872 = dma.vmem_to_hbm [thread:$0]  %s867, 128, %s4, [#allocation6], 64, 64, 4
        $region80: #{tpu_custom_call.1} parent=35 // pred_fallthru
          _
        // Predicated region
        $region81: #{tpu_custom_call.1} parent=35 // pred_check
          %p873 = pneg %p147
        $region82: #{tpu_custom_call.1} parent=35 // pred_check_branch
          %875 = sbr.rel (%p873) target = $region84
        $region83: #{tpu_custom_call.1} parent=35 // pred_region
          %876 = dma.done [#allocation6], 128
        $region84: #{tpu_custom_call.1} parent=35 // pred_fallthru
          _
      $region36: #{tpu_custom_call.1} parent=5 // pred_fallthru
        _
      %p877 = scmp.le.s32.totalorder 2, %s13
      // Predicated region
      $region85: #{tpu_custom_call.1} parent=5 // pred_check
        %p878 = pneg %p877
      $region86: #{tpu_custom_call.1} parent=5 // pred_check_branch
        %880 = sbr.rel (%p878) target = $region88
      $region87: #{tpu_custom_call.1} parent=5 // pred_region
        %s881 = ssub.s32 %s13, 2
      $region88: #{tpu_custom_call.1} parent=5 // pred_fallthru
        _
    $region6: #{tpu_custom_call.1} parent=1 // loop_footer
      %s17 = sadd.s32 1, %s13
    $region7: #{tpu_custom_call.1} parent=1 // loop_footer_branch
      %12 = sbr.rel target = $region3
    $region8: #{tpu_custom_call.1} parent=1 // loop_exit
      _
    %882 = vsyncpa [#allocation5], 1
    %s883 = scalar_lea.sflag [#allocation5], 1
    %884 = vsyncpa %s883, 1
    %885 = vsyncpa [#allocation8], 1
    %886 = vsyncpa [#allocation6], 1
    %s887 = scalar_lea.sflag [#allocation6], 1
    %888 = vsyncpa %s887, 1

</llo_original>
